<compile_context>
chip_gen: v7x
topology: tpu7x:2x2x1
jax: 0.10.0
libtpu: 0.0.40
codegen_flags: <defaults>
</compile_context>

<pallas_src>
import jax
import jax.numpy as jnp
from jax.experimental import pallas as pl
from jax.experimental.pallas import tpu as pltpu


def _round_up(x, m):
    return -(-x // m) * m


def _choose_tile_s(S, N, *, cap=65536, min_tile=512, target_steps=8):
    """Pick a lane-dense spatial tile (multiple of 128, or the full axis).

    - cap=65536 => per-step in+out HBM traffic = 2 MiB (f32, C=4); double
      buffered IO + f32 intermediates stay well under every chip's scoped VMEM.
    - shrink (halving) while the grid would have fewer than `target_steps`
      steps, so work still shards across v7x's 2 TensorCores.
    """
    tile = min(_round_up(S, 128), cap)
    if tile >= S:
        tile = S                      # full axis: always a legal block shape
    while (tile >= 2 * min_tile
           and tile % 256 == 0
           and N * (-(-S // tile)) < target_steps):
        tile //= 2
    return tile


def resnet_block_kernel(x_ref, w1_ref, b1_ref, w2_ref, b2_ref, o_ref):
    # x_ref / o_ref: (1, C, tile_s) slab, spatial on lanes (lane-dense IO).
    # w1_ref / w2_ref: (C, C) weights (y = W @ x), VMEM-resident across grid.
    # b1_ref / b2_ref: (C, 1) biases, broadcast over the lane axis.
    x = x_ref[0].astype(jnp.float32)                       # (C, tile_s)

    h = jnp.dot(w1_ref[...], x, preferred_element_type=jnp.float32) + b1_ref[...]
    h = jnp.where(h > 0, h, 0.01 * h)                      # leaky_relu(0.01)

    y = jnp.dot(w2_ref[...], h, preferred_element_type=jnp.float32) + b2_ref[...]
    y = y + x                                              # residual
    y = jnp.where(y > 0, y, 0.01 * y)                      # leaky_relu(0.01)

    o_ref[0] = y.astype(o_ref.dtype)                       # lane-dense store


def resnet_block_forward(x_ncdhw, w1, b1, w2, b2, *, tile_s=None):
    """x_ncdhw: (N, C, D, H, W) float32.
    w1, w2: (C, C, 1, 1, 1) PyTorch Conv3d weights; b1, b2: (C,)."""
    N, C, D, H, W = x_ncdhw.shape
    S = D * H * W

    # Pure reshape (row-major contiguous): no transpose, no extra HBM pass.
    x3 = x_ncdhw.reshape(N, C, S)

    if tile_s is None:
        tile_s = _choose_tile_s(S, N)

    w1m = w1.reshape(C, C)          # y = w @ x  (no transpose needed)
    w2m = w2.reshape(C, C)
    b1c = b1.reshape(C, 1)
    b2c = b2.reshape(C, 1)

    grid = (N, pl.cdiv(S, tile_s))  # ragged last block handled by Pallas

    itemsize = 4
    cost = pl.CostEstimate(
        flops=int(4 * N * S * C * C + 8 * N * S * C),
        transcendentals=0,
        bytes_accessed=int(2 * N * C * S * itemsize + 2 * C * C * itemsize
                           + 2 * C * itemsize),
    )

    out3 = pl.pallas_call(
        resnet_block_kernel,
        out_shape=jax.ShapeDtypeStruct((N, C, S), x3.dtype),
        grid_spec=pltpu.PrefetchScalarGridSpec(
            num_scalar_prefetch=0,
            grid=grid,
            in_specs=[
                pl.BlockSpec((1, C, tile_s), lambda n, s: (n, 0, s)),  # x slab
                pl.BlockSpec((C, C), lambda n, s: (0, 0)),             # W1
                pl.BlockSpec((C, 1), lambda n, s: (0, 0)),             # b1
                pl.BlockSpec((C, C), lambda n, s: (0, 0)),             # W2
                pl.BlockSpec((C, 1), lambda n, s: (0, 0)),             # b2
            ],
            out_specs=pl.BlockSpec((1, C, tile_s), lambda n, s: (n, 0, s)),
        ),
        compiler_params=pltpu.CompilerParams(
            dimension_semantics=("parallel", "parallel"),
        ),
        cost_estimate=cost,
    )(x3, w1m, b1c, w2m, b2c)

    return out3.reshape(N, C, D, H, W)


def reference_forward(x, w1, b1, w2, b2):
    """Plain-JAX reference matching the PyTorch module semantics."""
    C = x.shape[1]
    w1m = w1.reshape(C, C)
    w2m = w2.reshape(C, C)
    h = jnp.einsum("oc,ncdhw->nodhw", w1m, x) + b1[None, :, None, None, None]
    h = jnp.where(h > 0, h, 0.01 * h)
    y = jnp.einsum("oc,ncdhw->nodhw", w2m, h) + b2[None, :, None, None, None]
    y = y + x
    y = jnp.where(y > 0, y, 0.01 * y)
    return y


if __name__ == "__main__":
    key = jax.random.PRNGKey(0)
    ef_dim = 4
    N, D, H, W = 2, 16, 16, 16       # S = 4096 -> tile_s=1024, grid=(2,4)

    k_x, k_w1, k_b1, k_w2, k_b2 = jax.random.split(key, 5)

    # PyTorch-like uniform(-1/sqrt(fan_in), 1/sqrt(fan_in)) init.
    fan_in = ef_dim * 1 * 1 * 1
    bound = 1.0 / (fan_in ** 0.5)
    w1 = jax.random.uniform(k_w1, (ef_dim, ef_dim, 1, 1, 1), jnp.float32, -bound, bound)
    b1 = jax.random.uniform(k_b1, (ef_dim,), jnp.float32, -bound, bound)
    w2 = jax.random.uniform(k_w2, (ef_dim, ef_dim, 1, 1, 1), jnp.float32, -bound, bound)
    b2 = jax.random.uniform(k_b2, (ef_dim,), jnp.float32, -bound, bound)

    x = jax.random.normal(k_x, (N, ef_dim, D, H, W), jnp.float32)

    out = resnet_block_forward(x, w1, b1, w2, b2)
    out = jax.block_until_ready(out)

    ref = reference_forward(x, w1, b1, w2, b2)
    assert out.shape == ref.shape == (N, ef_dim, D, H, W)
    assert jnp.allclose(out, ref, atol=1e-5, rtol=1e-5), "mismatch vs reference"

    print("KERNEL_OK")
</pallas_src>

<mosaic_0001>
module attributes {stable_mosaic.version = 11 : i64} {
  func.func @resnet_block_kernel(%arg0: i32, %arg1: i32, %arg2: memref<1x4x1024xf32, #tpu.memory_space<vmem>>, %arg3: memref<4x4xf32, #tpu.memory_space<vmem>>, %arg4: memref<4x1xf32, #tpu.memory_space<vmem>>, %arg5: memref<4x4xf32, #tpu.memory_space<vmem>>, %arg6: memref<4x1xf32, #tpu.memory_space<vmem>>, %arg7: memref<1x4x1024xf32, #tpu.memory_space<vmem>>) attributes {dimension_semantics = [#tpu.dimension_semantics<parallel>, #tpu.dimension_semantics<parallel>], iteration_bounds = array<i64: 2, 4>, scalar_prefetch = 0 : i64, scratch_operands = 0 : i64, tpu.core_type = #tpu.core_type<tc>, window_params = [{transform_indices = @transform_0, window_bounds = array<i64: 1, 4, 1024>}, {pipeline_mode = #tpu.pipeline_mode<synchronous>, transform_indices = @transform_1, window_bounds = array<i64: 4, 4>}, {pipeline_mode = #tpu.pipeline_mode<synchronous>, transform_indices = @transform_2, window_bounds = array<i64: 4, 1>}, {pipeline_mode = #tpu.pipeline_mode<synchronous>, transform_indices = @transform_3, window_bounds = array<i64: 4, 4>}, {pipeline_mode = #tpu.pipeline_mode<synchronous>, transform_indices = @transform_4, window_bounds = array<i64: 4, 1>}, {transform_indices = @transform_5, window_bounds = array<i64: 1, 4, 1024>}]} {
    %c0 = arith.constant 0 : index
    %c0_0 = arith.constant 0 : index
    %c0_1 = arith.constant 0 : index
    %0 = vector.load %arg2[%c0, %c0_0, %c0_1] : memref<1x4x1024xf32, #tpu.memory_space<vmem>>, vector<1x4x1024xf32>
    %1 = vector.shape_cast %0 : vector<1x4x1024xf32> to vector<4x1024xf32>
    %c0_2 = arith.constant 0 : index
    %c0_3 = arith.constant 0 : index
    %2 = vector.load %arg3[%c0_2, %c0_3] : memref<4x4xf32, #tpu.memory_space<vmem>>, vector<4x4xf32>
    %cst = arith.constant dense<0.000000e+00> : vector<4x1024xf32>
    %3 = tpu.matmul %2, %1, %cst {dimension_numbers = #tpu.dot_dimension_numbers<[1], [0], [0], [1], [0, 0, 1, 1], [], []>} : vector<4x4xf32>, vector<4x1024xf32>, vector<4x1024xf32> -> vector<4x1024xf32>
    %c0_4 = arith.constant 0 : index
    %c0_5 = arith.constant 0 : index
    %4 = vector.load %arg4[%c0_4, %c0_5] : memref<4x1xf32, #tpu.memory_space<vmem>>, vector<4x1xf32>
    %5 = vector.broadcast %4 : vector<4x1xf32> to vector<4x1024xf32>
    %6 = arith.addf %3, %5 : vector<4x1024xf32>
    %cst_6 = arith.constant 0.000000e+00 : f32
    %7 = vector.broadcast %cst_6 : f32 to vector<4x1024xf32>
    %8 = arith.cmpf ogt, %6, %7 : vector<4x1024xf32>
    %cst_7 = arith.constant 0.00999999977 : f32
    %9 = vector.broadcast %cst_7 : f32 to vector<4x1024xf32>
    %10 = arith.mulf %9, %6 : vector<4x1024xf32>
    %11 = arith.select %8, %6, %10 : vector<4x1024xi1>, vector<4x1024xf32>
    %c0_8 = arith.constant 0 : index
    %c0_9 = arith.constant 0 : index
    %12 = vector.load %arg5[%c0_8, %c0_9] : memref<4x4xf32, #tpu.memory_space<vmem>>, vector<4x4xf32>
    %cst_10 = arith.constant dense<0.000000e+00> : vector<4x1024xf32>
    %13 = tpu.matmul %12, %11, %cst_10 {dimension_numbers = #tpu.dot_dimension_numbers<[1], [0], [0], [1], [0, 0, 1, 1], [], []>} : vector<4x4xf32>, vector<4x1024xf32>, vector<4x1024xf32> -> vector<4x1024xf32>
    %c0_11 = arith.constant 0 : index
    %c0_12 = arith.constant 0 : index
    %14 = vector.load %arg6[%c0_11, %c0_12] : memref<4x1xf32, #tpu.memory_space<vmem>>, vector<4x1xf32>
    %15 = vector.broadcast %14 : vector<4x1xf32> to vector<4x1024xf32>
    %16 = arith.addf %13, %15 : vector<4x1024xf32>
    %17 = arith.addf %16, %1 : vector<4x1024xf32>
    %cst_13 = arith.constant 0.000000e+00 : f32
    %18 = vector.broadcast %cst_13 : f32 to vector<4x1024xf32>
    %19 = arith.cmpf ogt, %17, %18 : vector<4x1024xf32>
    %cst_14 = arith.constant 0.00999999977 : f32
    %20 = vector.broadcast %cst_14 : f32 to vector<4x1024xf32>
    %21 = arith.mulf %20, %17 : vector<4x1024xf32>
    %22 = arith.select %19, %17, %21 : vector<4x1024xi1>, vector<4x1024xf32>
    %c0_15 = arith.constant 0 : index
    %c0_16 = arith.constant 0 : index
    %c0_17 = arith.constant 0 : index
    %23 = vector.load %arg7[%c0_15, %c0_16, %c0_17] : memref<1x4x1024xf32, #tpu.memory_space<vmem>>, vector<1x4x1024xf32>
    %24 = vector.shape_cast %23 : vector<1x4x1024xf32> to vector<4x1024xf32>
    %25 = vector.shape_cast %22 : vector<4x1024xf32> to vector<1x4x1024xf32>
    tpu.vector_store %arg7[%c0_15, %c0_16, %c0_17], %25 {strides = array<i32>} : memref<1x4x1024xf32, #tpu.memory_space<vmem>>, vector<1x4x1024xf32>,
    return
  }
  func.func @transform_0(%arg0: i32, %arg1: i32) -> (i32, i32, i32) {
    %c0_i32 = arith.constant 0 : i32
    %c0_i32_0 = arith.constant 0 : i32
    return %arg0, %c0_i32, %arg1 : i32, i32, i32
  }
  func.func @transform_1(%arg0: i32, %arg1: i32) -> (i32, i32) {
    %c0_i32 = arith.constant 0 : i32
    %c0_i32_0 = arith.constant 0 : i32
    %c0_i32_1 = arith.constant 0 : i32
    return %c0_i32, %c0_i32_0 : i32, i32
  }
  func.func @transform_2(%arg0: i32, %arg1: i32) -> (i32, i32) {
    %c0_i32 = arith.constant 0 : i32
    %c0_i32_0 = arith.constant 0 : i32
    %c0_i32_1 = arith.constant 0 : i32
    return %c0_i32, %c0_i32_0 : i32, i32
  }
  func.func @transform_3(%arg0: i32, %arg1: i32) -> (i32, i32) {
    %c0_i32 = arith.constant 0 : i32
    %c0_i32_0 = arith.constant 0 : i32
    %c0_i32_1 = arith.constant 0 : i32
    return %c0_i32, %c0_i32_0 : i32, i32
  }
  func.func @transform_4(%arg0: i32, %arg1: i32) -> (i32, i32) {
    %c0_i32 = arith.constant 0 : i32
    %c0_i32_0 = arith.constant 0 : i32
    %c0_i32_1 = arith.constant 0 : i32
    return %c0_i32, %c0_i32_0 : i32, i32
  }
  func.func @transform_5(%arg0: i32, %arg1: i32) -> (i32, i32, i32) {
    %c0_i32 = arith.constant 0 : i32
    %c0_i32_0 = arith.constant 0 : i32
    return %arg0, %c0_i32, %arg1 : i32, i32, i32
  }
}

</mosaic_0001>

<llo_original>
// kernel: tpu_custom_call.1
$region0: #{tpu_custom_call.1}
  #allocation0 [shape = 'u32[]', space=smem, size = 0x4, offset = 0x4, fixed_abs, tag = 'smem constant byte address 0x4 - core index']
  #allocation1 [shape = 'u32[144,128]{1,0:T(1,128)}', space=vmem, size = 0x12000, scoped, tag = 'internal scratch']
  %s0 = inlined_call_operand.hbm [shape: f32[2,4,4096], index: 0, kind: input, shape index: {}]
  %s1 = inlined_call_operand.vmem [shape: f32[4,4], index: 1, kind: input, shape index: {}]
  %s2 = inlined_call_operand.vmem [shape: f32[4,1], index: 2, kind: input, shape index: {}]
  %s3 = inlined_call_operand.vmem [shape: f32[4,4], index: 3, kind: input, shape index: {}]
  %s4 = inlined_call_operand.vmem [shape: f32[4,1], index: 4, kind: input, shape index: {}]
  %s5 = inlined_call_operand.hbm [shape: f32[2,4,4096], index: 5, kind: output, shape index: {}]
  %s6 = sld [smem:[#allocation0]]
  $region57: #{tpu_custom_call.1} parent=0
    _
  %s8 = ssub.s32 1, %s6
  %s9 = scalar_select 0, %s8, %s6
  $region1: #{tpu_custom_call.1} parent=0
    #allocation2 [shape = 'u8[32768]{0}', space=vmem, size = 0x8000, scoped, tag = 'input window, operand 0']
    #allocation3 [shape = 's32[2]{0}', space=sflag, size = 0x8, scoped, tag = 'scoped memory for tpu_custom_call.1']
    #allocation4 [shape = 's32[2]{0}', space=sflag, size = 0x8, scoped, tag = 'scoped memory for tpu_custom_call.1']
    #allocation5 [shape = 'u8[32768]{0}', space=vmem, size = 0x8000, scoped, tag = 'output window, operand 0']
    %10 = vsyncpa [#allocation3], 0
    %s11 = scalar_lea.sflag [#allocation3], 1
    %12 = vsyncpa %s11, 0
    %13 = vsyncpa [#allocation4], 0
    %s14 = scalar_lea.sflag [#allocation4], 1
    %15 = vsyncpa %s14, 0
    loop: start=0, step=1, limit=10
    $region2: #{tpu_custom_call.1} parent=1 // loop_pre_header
      _
    $region3: #{tpu_custom_call.1} parent=1 // loop_header
      %s17 = sphi 0, %s21
      %p18 = scmp.ge.s32.totalorder %s17, 10
      %s24 = sphi 0, %s36
      %s25 = sphi 0, %s32
      %s26 = sphi 0, %s24
      %s27 = sphi 0, %s25
      %s28 = sphi 0, %s26
      %s29 = sphi 0, %s27
      %s41 = sphi 0, %s43
      %s44 = sphi 0, %s41
      %s45 = sphi 0, %s44
      %s61 = sphi 0, %s45
      %s65 = sphi 0, %s65
      %s67 = sphi 0, %s65
      %s68 = sphi 0, %s67
      %s82 = sphi 0, %s68
      %s86 = sphi 0, %s86
      %s88 = sphi 0, %s86
      %s89 = sphi 0, %s88
      %s103 = sphi 0, %s89
      %s107 = sphi 0, %s107
      %s109 = sphi 0, %s107
      %s110 = sphi 0, %s109
      %s124 = sphi 0, %s110
      %s128 = sphi 0, %s128
      %s130 = sphi 0, %s128
      %s131 = sphi 0, %s130
      %s145 = sphi 0, %s131
      %s153 = sphi 0, %s155
      %s156 = sphi 0, %s153
      %s157 = sphi 0, %s156
      %s173 = sphi 0, %s157
    $region4: #{tpu_custom_call.1} parent=1 // loop_header_branch
      %20 = sbr.rel (%p18) target = $region8
    $region5: #{tpu_custom_call.1} parent=1 // loop_body
      %s22 = ssub.s32 %s17, 1
      %s23 = ssub.s32 %s17, 2
      %s30 = sadd.s32 1, %s25
      %p31 = scmp.ge.s32.totalorder %s30, 4
      %s32 = scalar_select %p31, 0, %s30
      %s33 = sadd.s32 1, %s24
      %s34 = scalar_select %p31, %s33, %s24
      %p35 = scmp.ge.s32.totalorder %s34, 2
      %s36 = scalar_select %p35, 0, %s34
      %s37 = ssub.s32 %s24, %s36
      %s38 = ssub.s32 %s25, %s32
      %s39 = sor.u32 %s37, %s38
      %p40 = scmp.eq.s32.totalorder %s39, 0
      %s42 = sadd.s32 %s41, 1
      %s43 = scalar_select %p40, %s41, %s42
      %p46 = pneg %p40
      %p47 = scmp.eq.s32.totalorder %s17, 7
      %p48 = por %p46, %p47
      %p49 = scmp.ne.s32.totalorder %s41, %s44
      %p50 = scmp.eq.s32.totalorder %s17, 0
      %p51 = por %p49, %p50
      %p52 = scmp.ne.s32.totalorder %s41, %s44
      %p53 = scmp.eq.s32.totalorder %s22, 7
      %p54 = por %p52, %p53
      %p55 = scmp.ne.s32.totalorder %s44, %s45
      %p56 = scmp.eq.s32.totalorder %s22, 0
      %p57 = por %p55, %p56
      %p58 = scmp.ne.s32.totalorder %s44, %s45
      %p59 = scmp.eq.s32.totalorder %s23, 7
      %p60 = por %p58, %p59
      %p62 = scmp.ne.s32.totalorder %s45, %s61
      %p63 = scmp.eq.s32.totalorder %s23, 0
      %p64 = por %p62, %p63
      %s66 = sadd.s32 %s65, 1
      %p69 = scmp.eq.s32.totalorder %s17, 7
      %p70 = scmp.ne.s32.totalorder %s65, %s67
      %p71 = scmp.eq.s32.totalorder %s17, 0
      %p72 = por %p70, %p71
      %p73 = scmp.ne.s32.totalorder %s65, %s67
      %p74 = scmp.eq.s32.totalorder %s22, 7
      %p75 = por %p73, %p74
      %p76 = scmp.ne.s32.totalorder %s67, %s68
      %p77 = scmp.eq.s32.totalorder %s22, 0
      %p78 = por %p76, %p77
      %p79 = scmp.ne.s32.totalorder %s67, %s68
      %p80 = scmp.eq.s32.totalorder %s23, 7
      %p81 = por %p79, %p80
      %p83 = scmp.ne.s32.totalorder %s68, %s82
      %p84 = scmp.eq.s32.totalorder %s23, 0
      %p85 = por %p83, %p84
      %s87 = sadd.s32 %s86, 1
      %p90 = scmp.eq.s32.totalorder %s17, 7
      %p91 = scmp.ne.s32.totalorder %s86, %s88
      %p92 = scmp.eq.s32.totalorder %s17, 0
      %p93 = por %p91, %p92
      %p94 = scmp.ne.s32.totalorder %s86, %s88
      %p95 = scmp.eq.s32.totalorder %s22, 7
      %p96 = por %p94, %p95
      %p97 = scmp.ne.s32.totalorder %s88, %s89
      %p98 = scmp.eq.s32.totalorder %s22, 0
      %p99 = por %p97, %p98
      %p100 = scmp.ne.s32.totalorder %s88, %s89
      %p101 = scmp.eq.s32.totalorder %s23, 7
      %p102 = por %p100, %p101
      %p104 = scmp.ne.s32.totalorder %s89, %s103
      %p105 = scmp.eq.s32.totalorder %s23, 0
      %p106 = por %p104, %p105
      %s108 = sadd.s32 %s107, 1
      %p111 = scmp.eq.s32.totalorder %s17, 7
      %p112 = scmp.ne.s32.totalorder %s107, %s109
      %p113 = scmp.eq.s32.totalorder %s17, 0
      %p114 = por %p112, %p113
      %p115 = scmp.ne.s32.totalorder %s107, %s109
      %p116 = scmp.eq.s32.totalorder %s22, 7
      %p117 = por %p115, %p116
      %p118 = scmp.ne.s32.totalorder %s109, %s110
      %p119 = scmp.eq.s32.totalorder %s22, 0
      %p120 = por %p118, %p119
      %p121 = scmp.ne.s32.totalorder %s109, %s110
      %p122 = scmp.eq.s32.totalorder %s23, 7
      %p123 = por %p121, %p122
      %p125 = scmp.ne.s32.totalorder %s110, %s124
      %p126 = scmp.eq.s32.totalorder %s23, 0
      %p127 = por %p125, %p126
      %s129 = sadd.s32 %s128, 1
      %p132 = scmp.eq.s32.totalorder %s17, 7
      %p133 = scmp.ne.s32.totalorder %s128, %s130
      %p134 = scmp.eq.s32.totalorder %s17, 0
      %p135 = por %p133, %p134
      %p136 = scmp.ne.s32.totalorder %s128, %s130
      %p137 = scmp.eq.s32.totalorder %s22, 7
      %p138 = por %p136, %p137
      %p139 = scmp.ne.s32.totalorder %s130, %s131
      %p140 = scmp.eq.s32.totalorder %s22, 0
      %p141 = por %p139, %p140
      %p142 = scmp.ne.s32.totalorder %s130, %s131
      %p143 = scmp.eq.s32.totalorder %s23, 7
      %p144 = por %p142, %p143
      %p146 = scmp.ne.s32.totalorder %s131, %s145
      %p147 = scmp.eq.s32.totalorder %s23, 0
      %p148 = por %p146, %p147
      %s149 = ssub.s32 %s24, %s36
      %s150 = ssub.s32 %s25, %s32
      %s151 = sor.u32 %s149, %s150
      %p152 = scmp.eq.s32.totalorder %s151, 0
      %s154 = sadd.s32 %s153, 1
      %s155 = scalar_select %p152, %s153, %s154
      %p158 = pneg %p152
      %p159 = scmp.eq.s32.totalorder %s17, 7
      %p160 = por %p158, %p159
      %p161 = scmp.ne.s32.totalorder %s153, %s156
      %p162 = scmp.eq.s32.totalorder %s17, 0
      %p163 = por %p161, %p162
      %p164 = scmp.ne.s32.totalorder %s153, %s156
      %p165 = scmp.eq.s32.totalorder %s22, 7
      %p166 = por %p164, %p165
      %p167 = scmp.ne.s32.totalorder %s156, %s157
      %p168 = scmp.eq.s32.totalorder %s22, 0
      %p169 = por %p167, %p168
      %p170 = scmp.ne.s32.totalorder %s156, %s157
      %p171 = scmp.eq.s32.totalorder %s23, 7
      %p172 = por %p170, %p171
      %p174 = scmp.ne.s32.totalorder %s157, %s173
      %p175 = scmp.eq.s32.totalorder %s23, 0
      %p176 = por %p174, %p175
      %p177 = scmp.le.s32.totalorder 1, %s17
      %p178 = scmp.lt.s32.totalorder %s17, 9
      %p179 = pnand %p177, %p178
      %p180 = pneg %p179
      // Predicated region
      $region9: #{tpu_custom_call.1} parent=5 // pred_check
        _
      $region10: #{tpu_custom_call.1} parent=5 // pred_check_branch
        %182 = sbr.rel (%p179) target = $region12
      $region11: #{tpu_custom_call.1} parent=5 // pred_region
        %s183 = ssub.s32 %s17, 1
        // Predicated region
        $region13: #{tpu_custom_call.1} parent=11 // pred_check
          %p184 = pneg %p78
        $region14: #{tpu_custom_call.1} parent=11 // pred_check_branch
          %186 = sbr.rel (%p184) target = $region16
        $region15: #{tpu_custom_call.1} parent=11 // pred_region
          _
        $region16: #{tpu_custom_call.1} parent=11 // pred_fallthru
          _
        // Predicated region
        $region17: #{tpu_custom_call.1} parent=11 // pred_check
          %p187 = pneg %p99
        $region18: #{tpu_custom_call.1} parent=11 // pred_check_branch
          %189 = sbr.rel (%p187) target = $region20
        $region19: #{tpu_custom_call.1} parent=11 // pred_region
          _
        $region20: #{tpu_custom_call.1} parent=11 // pred_fallthru
          _
        // Predicated region
        $region21: #{tpu_custom_call.1} parent=11 // pred_check
          %p190 = pneg %p120
        $region22: #{tpu_custom_call.1} parent=11 // pred_check_branch
          %192 = sbr.rel (%p190) target = $region24
        $region23: #{tpu_custom_call.1} parent=11 // pred_region
          _
        $region24: #{tpu_custom_call.1} parent=11 // pred_fallthru
          _
        // Predicated region
        $region25: #{tpu_custom_call.1} parent=11 // pred_check
          %p193 = pneg %p141
        $region26: #{tpu_custom_call.1} parent=11 // pred_check_branch
          %195 = sbr.rel (%p193) target = $region28
        $region27: #{tpu_custom_call.1} parent=11 // pred_region
          _
        $region28: #{tpu_custom_call.1} parent=11 // pred_fallthru
          _
      $region12: #{tpu_custom_call.1} parent=5 // pred_fallthru
        _
      %p196 = scmp.lt.s32.totalorder %s17, 8
      // Predicated region
      $region29: #{tpu_custom_call.1} parent=5 // pred_check
        %p197 = pneg %p196
      $region30: #{tpu_custom_call.1} parent=5 // pred_check_branch
        %199 = sbr.rel (%p197) target = $region32
      $region31: #{tpu_custom_call.1} parent=5 // pred_region
        // Predicated region
        $region33: #{tpu_custom_call.1} parent=31 // pred_check
          %p200 = pneg %p51
        $region34: #{tpu_custom_call.1} parent=31 // pred_check_branch
          %202 = sbr.rel (%p200) target = $region36
        $region35: #{tpu_custom_call.1} parent=31 // pred_region
          %s203 = sand.u32 %s41, 1
          %s204 = scalar_lea.sflag [#allocation3], %s203
          %s205 = sand.u32 %s41, 1
          %s206 = smul.addr %s205, 32
          %s207 = scalar_lea.vmem [#allocation2], %s206
          %s208 = smul.u32 8, %s25
          %s210 = ssub.s32 512, 512
          %211 = vsyncadd %s204, %s210
          %s212 = smul.addr %s24, 32
          %s213 = sadd.s32 %s208, %s212
          %s214 = smul.addr %s213, 64
          %s215 = scalar_lea.hbm %s0, %s214
          %s217 = sshll.u32 %s207, 4
          %s218 = int_to_ptr.vmem [resolvable:$true] %s217
          %220 = dma.hbm_to_vmem [thread:$0]  %s215, 512, %s218, %s204
        $region36: #{tpu_custom_call.1} parent=31 // pred_fallthru
          _
      $region32: #{tpu_custom_call.1} parent=5 // pred_fallthru
        _
      %p221 = scmp.le.s32.totalorder 1, %s17
      %p222 = scmp.lt.s32.totalorder %s17, 9
      %p223 = pnand %p221, %p222
      %p224 = pneg %p223
      // Predicated region
      $region37: #{tpu_custom_call.1} parent=5 // pred_check
        _
      $region38: #{tpu_custom_call.1} parent=5 // pred_check_branch
        %226 = sbr.rel (%p223) target = $region40
      $region39: #{tpu_custom_call.1} parent=5 // pred_region
        %s227 = ssub.s32 %s17, 1
        %s228 = sand.u32 %s44, 1
        %s229 = scalar_lea.sflag [#allocation3], %s228
        %s230 = sand.u32 %s44, 1
        %s231 = smul.addr %s230, 32
        %s232 = scalar_lea.vmem [#allocation2], %s231
        // Predicated region
        $region41: #{tpu_custom_call.1} parent=39 // pred_check
          %p233 = pneg %p57
        $region42: #{tpu_custom_call.1} parent=39 // pred_check_branch
          %235 = sbr.rel (%p233) target = $region44
        $region43: #{tpu_custom_call.1} parent=39 // pred_region
          %236 = dma.done %s229, 512
        $region44: #{tpu_custom_call.1} parent=39 // pred_fallthru
          _
        %s237 = sand.u32 %s44, 1
        %s238 = scalar_lea.sflag [#allocation3], %s237
        %s239 = sand.u32 %s44, 1
        %s240 = smul.addr %s239, 32
        %s241 = scalar_lea.vmem [#allocation2], %s240
        %p242 = pneg %p57
        %p243 = pneg %p54
        %p244 = pneg %p78
        %p245 = pneg %p75
        %p246 = pneg %p99
        %p247 = pneg %p96
        %p248 = pneg %p120
        %p249 = pneg %p117
        %p250 = pneg %p141
        %p251 = pneg %p138
        %p252 = pneg %p169
        %p253 = pneg %p166
        %s254 = sand.u32 %s156, 1
        %s255 = scalar_lea.sflag [#allocation4], %s254
        %s256 = sand.u32 %s156, 1
        %s257 = smul.addr %s256, 32
        %s258 = scalar_lea.vmem [#allocation5], %s257
        %s259 = smul.u32 8, %s27
        %s260 = smul.u32 8, %s27
        %v261 = vld [vmem:[%s232] sm:$0xff]
        %v262 = vld [vmem:[%s232 + $0x8] sm:$0xff]
        %v263 = vld [vmem:[%s232 + $0x10] sm:$0xff]
        %v264 = vld [vmem:[%s232 + $0x18] sm:$0xff]
        %v265 = vld [vmem:[%s1] sm:$0xf]
        %v266 = vld [vmem:[%s2] sm:$0xf]
        %268 = vset.pattern.permute.xlu0 0
        %269 = vperm.xlu0 %268, %v266
        %v270 = vpop.permute.xlu0 %269
        %v276 = vcombine.high %v261, %v261
        %v277 = vcombine.high %v262, %v262
        %v278 = vcombine.high %v263, %v263
        %v279 = vcombine.high %v264, %v264
        %vm280 = vcmask 31744
        %v282 = vsel %vm280, %v265, 0
        %vm284 = vcmask 1043456
        %v285 = vsel %vm284, %v261, 0
        %v287 = vsel %vm284, %v276, 0
        %v289 = vsel %vm284, %v262, 0
        %v291 = vsel %vm284, %v277, 0
        %v293 = vsel %vm284, %v263, 0
        %v295 = vsel %vm284, %v278, 0
        %v297 = vsel %vm284, %v264, 0
        %v299 = vsel %vm284, %v279, 0
        %301 = vmatprep.subr.mxu0 %v287
        %302 = vmatpush1.msra.mxu0 %v285
        %303 = vmatprep.subr.mxu0 0.0
        %304 = vmatpush1.msra.mxu0 0.0
        %305 = vmatprep.subr.mxu0 0.0
        %306 = vmatpush1.msra.mxu0 0.0
        %307 = vmatprep.subr.mxu0 0.0
        %308 = vmatpush1.msra.mxu0 0.0
        %309 = vmatprep.subr.mxu0 0.0
        %310 = vmatpush1.msra.mxu0 0.0
        %311 = vmatprep.subr.mxu0 0.0
        %312 = vmatpush1.msra.mxu0 0.0
        %313 = vmatprep.subr.mxu0 0.0
        %314 = vmatpush1.msra.mxu0 0.0
        %315 = vmatprep.subr.mxu0 0.0
        %316 = vmatpush1.msra.mxu0 0.0
        %317 = vmatprep.subr.mxu0 0.0
        %318 = vmatpush1.msra.mxu0 0.0
        %319 = vmatprep.subr.mxu0 0.0
        %320 = vmatpush1.msra.mxu0 0.0
        %321 = vmatprep.subr.mxu0 0.0
        %322 = vmatpush1.msra.mxu0 0.0
        %323 = vmatprep.subr.mxu0 0.0
        %324 = vmatpush1.msra.mxu0 0.0
        %325 = vmatprep.subr.mxu0 0.0
        %326 = vmatpush1.msra.mxu0 0.0
        %327 = vmatprep.subr.mxu0 0.0
        %328 = vmatpush1.msra.mxu0 0.0
        %329 = vmatprep.subr.mxu0 0.0
        %330 = vmatpush1.msra.mxu0 0.0
        %331 = vmatprep.subr.mxu0 0.0
        %332 = vmatpush1.msra.mxu0 0.0
        %333 = vmatprep.subr.mxu0 0.0
        %334 = vmatpush1.msra.mxu0 0.0
        %335 = vmatprep.subr.mxu0 0.0
        %336 = vmatpush1.msra.mxu0 0.0
        %337 = vmatprep.subr.mxu0 0.0
        %338 = vmatpush1.msra.mxu0 0.0
        %339 = vmatprep.subr.mxu0 0.0
        %340 = vmatpush1.msra.mxu0 0.0
        %341 = vmatprep.subr.mxu0 0.0
        %342 = vmatpush1.msra.mxu0 0.0
        %343 = vmatprep.subr.mxu0 0.0
        %344 = vmatpush1.msra.mxu0 0.0
        %345 = vmatprep.subr.mxu0 0.0
        %346 = vmatpush1.msra.mxu0 0.0
        %347 = vmatprep.subr.mxu0 0.0
        %348 = vmatpush1.msra.mxu0 0.0
        %349 = vmatprep.subr.mxu0 0.0
        %350 = vmatpush1.msra.mxu0 0.0
        %351 = vmatprep.subr.mxu0 0.0
        %352 = vmatpush1.msra.mxu0 0.0
        %353 = vmatprep.subr.mxu0 0.0
        %354 = vmatpush1.msra.mxu0 0.0
        %355 = vmatprep.subr.mxu0 0.0
        %356 = vmatpush1.msra.mxu0 0.0
        %357 = vmatprep.subr.mxu0 0.0
        %358 = vmatpush1.msra.mxu0 0.0
        %359 = vmatprep.subr.mxu0 0.0
        %360 = vmatpush1.msra.mxu0 0.0
        %361 = vmatprep.subr.mxu0 0.0
        %362 = vmatpush1.msra.mxu0 0.0
        %363 = vmatprep.subr.mxu0 0.0
        %364 = vmatpush1.msra.mxu0 0.0
        %365 = vmatprep.mubr.f32.mxu0 0.0
        %366 = vmatmul.mubr.f32.gmra.mrb[0].mxu0 %v282
        %v367 = vpop.f32.mrb[0].mxu0
        %v368 = vadd.f32 %v270, %v367
        %v369 = vpop.f32.mrb[0].mxu0
        %v370 = vadd.f32 %v270, %v369
        %371 = vdwg.mxu0
        %372 = vmatprep.subr.mxu0 %v291
        %373 = vmatpush1.msra.mxu0 %v289
        %374 = vmatprep.subr.mxu0 0.0
        %375 = vmatpush1.msra.mxu0 0.0
        %376 = vmatprep.subr.mxu0 0.0
        %377 = vmatpush1.msra.mxu0 0.0
        %378 = vmatprep.subr.mxu0 0.0
        %379 = vmatpush1.msra.mxu0 0.0
        %380 = vmatprep.subr.mxu0 0.0
        %381 = vmatpush1.msra.mxu0 0.0
        %382 = vmatprep.subr.mxu0 0.0
        %383 = vmatpush1.msra.mxu0 0.0
        %384 = vmatprep.subr.mxu0 0.0
        %385 = vmatpush1.msra.mxu0 0.0
        %386 = vmatprep.subr.mxu0 0.0
        %387 = vmatpush1.msra.mxu0 0.0
        %388 = vmatprep.subr.mxu0 0.0
        %389 = vmatpush1.msra.mxu0 0.0
        %390 = vmatprep.subr.mxu0 0.0
        %391 = vmatpush1.msra.mxu0 0.0
        %392 = vmatprep.subr.mxu0 0.0
        %393 = vmatpush1.msra.mxu0 0.0
        %394 = vmatprep.subr.mxu0 0.0
        %395 = vmatpush1.msra.mxu0 0.0
        %396 = vmatprep.subr.mxu0 0.0
        %397 = vmatpush1.msra.mxu0 0.0
        %398 = vmatprep.subr.mxu0 0.0
        %399 = vmatpush1.msra.mxu0 0.0
        %400 = vmatprep.subr.mxu0 0.0
        %401 = vmatpush1.msra.mxu0 0.0
        %402 = vmatprep.subr.mxu0 0.0
        %403 = vmatpush1.msra.mxu0 0.0
        %404 = vmatprep.subr.mxu0 0.0
        %405 = vmatpush1.msra.mxu0 0.0
        %406 = vmatprep.subr.mxu0 0.0
        %407 = vmatpush1.msra.mxu0 0.0
        %408 = vmatprep.subr.mxu0 0.0
        %409 = vmatpush1.msra.mxu0 0.0
        %410 = vmatprep.subr.mxu0 0.0
        %411 = vmatpush1.msra.mxu0 0.0
        %412 = vmatprep.subr.mxu0 0.0
        %413 = vmatpush1.msra.mxu0 0.0
        %414 = vmatprep.subr.mxu0 0.0
        %415 = vmatpush1.msra.mxu0 0.0
        %416 = vmatprep.subr.mxu0 0.0
        %417 = vmatpush1.msra.mxu0 0.0
        %418 = vmatprep.subr.mxu0 0.0
        %419 = vmatpush1.msra.mxu0 0.0
        %420 = vmatprep.subr.mxu0 0.0
        %421 = vmatpush1.msra.mxu0 0.0
        %422 = vmatprep.subr.mxu0 0.0
        %423 = vmatpush1.msra.mxu0 0.0
        %424 = vmatprep.subr.mxu0 0.0
        %425 = vmatpush1.msra.mxu0 0.0
        %426 = vmatprep.subr.mxu0 0.0
        %427 = vmatpush1.msra.mxu0 0.0
        %428 = vmatprep.subr.mxu0 0.0
        %429 = vmatpush1.msra.mxu0 0.0
        %430 = vmatprep.subr.mxu0 0.0
        %431 = vmatpush1.msra.mxu0 0.0
        %432 = vmatprep.subr.mxu0 0.0
        %433 = vmatpush1.msra.mxu0 0.0
        %434 = vmatprep.subr.mxu0 0.0
        %435 = vmatpush1.msra.mxu0 0.0
        %436 = vmatprep.mubr.f32.mxu0 0.0
        %437 = vmatmul.mubr.f32.gmra.mrb[0].mxu0 %v282
        %v438 = vpop.f32.mrb[0].mxu0
        %v439 = vadd.f32 %v270, %v438
        %v440 = vpop.f32.mrb[0].mxu0
        %v441 = vadd.f32 %v270, %v440
        %442 = vdwg.mxu0
        %443 = vmatprep.subr.mxu0 %v295
        %444 = vmatpush1.msra.mxu0 %v293
        %445 = vmatprep.subr.mxu0 0.0
        %446 = vmatpush1.msra.mxu0 0.0
        %447 = vmatprep.subr.mxu0 0.0
        %448 = vmatpush1.msra.mxu0 0.0
        %449 = vmatprep.subr.mxu0 0.0
        %450 = vmatpush1.msra.mxu0 0.0
        %451 = vmatprep.subr.mxu0 0.0
        %452 = vmatpush1.msra.mxu0 0.0
        %453 = vmatprep.subr.mxu0 0.0
        %454 = vmatpush1.msra.mxu0 0.0
        %455 = vmatprep.subr.mxu0 0.0
        %456 = vmatpush1.msra.mxu0 0.0
        %457 = vmatprep.subr.mxu0 0.0
        %458 = vmatpush1.msra.mxu0 0.0
        %459 = vmatprep.subr.mxu0 0.0
        %460 = vmatpush1.msra.mxu0 0.0
        %461 = vmatprep.subr.mxu0 0.0
        %462 = vmatpush1.msra.mxu0 0.0
        %463 = vmatprep.subr.mxu0 0.0
        %464 = vmatpush1.msra.mxu0 0.0
        %465 = vmatprep.subr.mxu0 0.0
        %466 = vmatpush1.msra.mxu0 0.0
        %467 = vmatprep.subr.mxu0 0.0
        %468 = vmatpush1.msra.mxu0 0.0
        %469 = vmatprep.subr.mxu0 0.0
        %470 = vmatpush1.msra.mxu0 0.0
        %471 = vmatprep.subr.mxu0 0.0
        %472 = vmatpush1.msra.mxu0 0.0
        %473 = vmatprep.subr.mxu0 0.0
        %474 = vmatpush1.msra.mxu0 0.0
        %475 = vmatprep.subr.mxu0 0.0
        %476 = vmatpush1.msra.mxu0 0.0
        %477 = vmatprep.subr.mxu0 0.0
        %478 = vmatpush1.msra.mxu0 0.0
        %479 = vmatprep.subr.mxu0 0.0
        %480 = vmatpush1.msra.mxu0 0.0
        %481 = vmatprep.subr.mxu0 0.0
        %482 = vmatpush1.msra.mxu0 0.0
        %483 = vmatprep.subr.mxu0 0.0
        %484 = vmatpush1.msra.mxu0 0.0
        %485 = vmatprep.subr.mxu0 0.0
        %486 = vmatpush1.msra.mxu0 0.0
        %487 = vmatprep.subr.mxu0 0.0
        %488 = vmatpush1.msra.mxu0 0.0
        %489 = vmatprep.subr.mxu0 0.0
        %490 = vmatpush1.msra.mxu0 0.0
        %491 = vmatprep.subr.mxu0 0.0
        %492 = vmatpush1.msra.mxu0 0.0
        %493 = vmatprep.subr.mxu0 0.0
        %494 = vmatpush1.msra.mxu0 0.0
        %495 = vmatprep.subr.mxu0 0.0
        %496 = vmatpush1.msra.mxu0 0.0
        %497 = vmatprep.subr.mxu0 0.0
        %498 = vmatpush1.msra.mxu0 0.0
        %499 = vmatprep.subr.mxu0 0.0
        %500 = vmatpush1.msra.mxu0 0.0
        %501 = vmatprep.subr.mxu0 0.0
        %502 = vmatpush1.msra.mxu0 0.0
        %503 = vmatprep.subr.mxu0 0.0
        %504 = vmatpush1.msra.mxu0 0.0
        %505 = vmatprep.subr.mxu0 0.0
        %506 = vmatpush1.msra.mxu0 0.0
        %507 = vmatprep.mubr.f32.mxu0 0.0
        %508 = vmatmul.mubr.f32.gmra.mrb[0].mxu0 %v282
        %v509 = vpop.f32.mrb[0].mxu0
        %v510 = vadd.f32 %v270, %v509
        %v511 = vpop.f32.mrb[0].mxu0
        %v512 = vadd.f32 %v270, %v511
        %513 = vdwg.mxu0
        %514 = vmatprep.subr.mxu0 %v299
        %515 = vmatpush1.msra.mxu0 %v297
        %516 = vmatprep.subr.mxu0 0.0
        %517 = vmatpush1.msra.mxu0 0.0
        %518 = vmatprep.subr.mxu0 0.0
        %519 = vmatpush1.msra.mxu0 0.0
        %520 = vmatprep.subr.mxu0 0.0
        %521 = vmatpush1.msra.mxu0 0.0
        %522 = vmatprep.subr.mxu0 0.0
        %523 = vmatpush1.msra.mxu0 0.0
        %524 = vmatprep.subr.mxu0 0.0
        %525 = vmatpush1.msra.mxu0 0.0
        %526 = vmatprep.subr.mxu0 0.0
        %527 = vmatpush1.msra.mxu0 0.0
        %528 = vmatprep.subr.mxu0 0.0
        %529 = vmatpush1.msra.mxu0 0.0
        %530 = vmatprep.subr.mxu0 0.0
        %531 = vmatpush1.msra.mxu0 0.0
        %532 = vmatprep.subr.mxu0 0.0
        %533 = vmatpush1.msra.mxu0 0.0
        %534 = vmatprep.subr.mxu0 0.0
        %535 = vmatpush1.msra.mxu0 0.0
        %536 = vmatprep.subr.mxu0 0.0
        %537 = vmatpush1.msra.mxu0 0.0
        %538 = vmatprep.subr.mxu0 0.0
        %539 = vmatpush1.msra.mxu0 0.0
        %540 = vmatprep.subr.mxu0 0.0
        %541 = vmatpush1.msra.mxu0 0.0
        %542 = vmatprep.subr.mxu0 0.0
        %543 = vmatpush1.msra.mxu0 0.0
        %544 = vmatprep.subr.mxu0 0.0
        %545 = vmatpush1.msra.mxu0 0.0
        %546 = vmatprep.subr.mxu0 0.0
        %547 = vmatpush1.msra.mxu0 0.0
        %548 = vmatprep.subr.mxu0 0.0
        %549 = vmatpush1.msra.mxu0 0.0
        %550 = vmatprep.subr.mxu0 0.0
        %551 = vmatpush1.msra.mxu0 0.0
        %552 = vmatprep.subr.mxu0 0.0
        %553 = vmatpush1.msra.mxu0 0.0
        %554 = vmatprep.subr.mxu0 0.0
        %555 = vmatpush1.msra.mxu0 0.0
        %556 = vmatprep.subr.mxu0 0.0
        %557 = vmatpush1.msra.mxu0 0.0
        %558 = vmatprep.subr.mxu0 0.0
        %559 = vmatpush1.msra.mxu0 0.0
        %560 = vmatprep.subr.mxu0 0.0
        %561 = vmatpush1.msra.mxu0 0.0
        %562 = vmatprep.subr.mxu0 0.0
        %563 = vmatpush1.msra.mxu0 0.0
        %564 = vmatprep.subr.mxu0 0.0
        %565 = vmatpush1.msra.mxu0 0.0
        %566 = vmatprep.subr.mxu0 0.0
        %567 = vmatpush1.msra.mxu0 0.0
        %568 = vmatprep.subr.mxu0 0.0
        %569 = vmatpush1.msra.mxu0 0.0
        %570 = vmatprep.subr.mxu0 0.0
        %571 = vmatpush1.msra.mxu0 0.0
        %572 = vmatprep.subr.mxu0 0.0
        %573 = vmatpush1.msra.mxu0 0.0
        %574 = vmatprep.subr.mxu0 0.0
        %575 = vmatpush1.msra.mxu0 0.0
        %576 = vmatprep.subr.mxu0 0.0
        %577 = vmatpush1.msra.mxu0 0.0
        %578 = vmatprep.mubr.f32.mxu0 0.0
        %579 = vmatmul.mubr.f32.gmra.mrb[0].mxu0 %v282
        %v580 = vpop.f32.mrb[0].mxu0
        %v581 = vadd.f32 %v270, %v580
        %v582 = vpop.f32.mrb[0].mxu0
        %v583 = vadd.f32 %v270, %v582
        %584 = vdwg.mxu0
        %vm585 = vcmp.gt.f32.partialorder %v368, 0.0
        %vm586 = vcmp.gt.f32.partialorder %v370, 0.0
        %vm587 = vcmp.gt.f32.partialorder %v439, 0.0
        %vm588 = vcmp.gt.f32.partialorder %v441, 0.0
        %vm589 = vcmp.gt.f32.partialorder %v510, 0.0
        %vm590 = vcmp.gt.f32.partialorder %v512, 0.0
        %vm591 = vcmp.gt.f32.partialorder %v581, 0.0
        %vm592 = vcmp.gt.f32.partialorder %v583, 0.0
        %v593 = vmul.f32 %v368, 0.01
        %v594 = vmul.f32 %v370, 0.01
        %v595 = vmul.f32 %v439, 0.01
        %v596 = vmul.f32 %v441, 0.01
        %v597 = vmul.f32 %v510, 0.01
        %v598 = vmul.f32 %v512, 0.01
        %v599 = vmul.f32 %v581, 0.01
        %v600 = vmul.f32 %v583, 0.01
        %v601 = vsel %vm585, %v368, %v593
        %v602 = vsel %vm586, %v370, %v594
        %v603 = vsel %vm587, %v439, %v595
        %v604 = vsel %vm588, %v441, %v596
        %v605 = vsel %vm589, %v510, %v597
        %v606 = vsel %vm590, %v512, %v598
        %v607 = vsel %vm591, %v581, %v599
        %v608 = vsel %vm592, %v583, %v600
        %v609 = vld [vmem:[%s3] sm:$0xf]
        %v610 = vld [vmem:[%s4] sm:$0xf]
        %612 = vset.pattern.permute.xlu0 0
        %613 = vperm.xlu0 %612, %v610
        %v614 = vpop.permute.xlu0 %613
        %v617 = vsel %vm280, %v609, 0
        %v620 = vsel %vm284, %v601, 0
        %v623 = vsel %vm284, %v602, 0
        %v626 = vsel %vm284, %v603, 0
        %v629 = vsel %vm284, %v604, 0
        %v632 = vsel %vm284, %v605, 0
        %v635 = vsel %vm284, %v606, 0
        %v638 = vsel %vm284, %v607, 0
        %v641 = vsel %vm284, %v608, 0
        %643 = vmatprep.subr.mxu0 %v623
        %644 = vmatpush1.msra.mxu0 %v620
        %645 = vmatprep.subr.mxu0 0.0
        %646 = vmatpush1.msra.mxu0 0.0
        %647 = vmatprep.subr.mxu0 0.0
        %648 = vmatpush1.msra.mxu0 0.0
        %649 = vmatprep.subr.mxu0 0.0
        %650 = vmatpush1.msra.mxu0 0.0
        %651 = vmatprep.subr.mxu0 0.0
        %652 = vmatpush1.msra.mxu0 0.0
        %653 = vmatprep.subr.mxu0 0.0
        %654 = vmatpush1.msra.mxu0 0.0
        %655 = vmatprep.subr.mxu0 0.0
        %656 = vmatpush1.msra.mxu0 0.0
        %657 = vmatprep.subr.mxu0 0.0
        %658 = vmatpush1.msra.mxu0 0.0
        %659 = vmatprep.subr.mxu0 0.0
        %660 = vmatpush1.msra.mxu0 0.0
        %661 = vmatprep.subr.mxu0 0.0
        %662 = vmatpush1.msra.mxu0 0.0
        %663 = vmatprep.subr.mxu0 0.0
        %664 = vmatpush1.msra.mxu0 0.0
        %665 = vmatprep.subr.mxu0 0.0
        %666 = vmatpush1.msra.mxu0 0.0
        %667 = vmatprep.subr.mxu0 0.0
        %668 = vmatpush1.msra.mxu0 0.0
        %669 = vmatprep.subr.mxu0 0.0
        %670 = vmatpush1.msra.mxu0 0.0
        %671 = vmatprep.subr.mxu0 0.0
        %672 = vmatpush1.msra.mxu0 0.0
        %673 = vmatprep.subr.mxu0 0.0
        %674 = vmatpush1.msra.mxu0 0.0
        %675 = vmatprep.subr.mxu0 0.0
        %676 = vmatpush1.msra.mxu0 0.0
        %677 = vmatprep.subr.mxu0 0.0
        %678 = vmatpush1.msra.mxu0 0.0
        %679 = vmatprep.subr.mxu0 0.0
        %680 = vmatpush1.msra.mxu0 0.0
        %681 = vmatprep.subr.mxu0 0.0
        %682 = vmatpush1.msra.mxu0 0.0
        %683 = vmatprep.subr.mxu0 0.0
        %684 = vmatpush1.msra.mxu0 0.0
        %685 = vmatprep.subr.mxu0 0.0
        %686 = vmatpush1.msra.mxu0 0.0
        %687 = vmatprep.subr.mxu0 0.0
        %688 = vmatpush1.msra.mxu0 0.0
        %689 = vmatprep.subr.mxu0 0.0
        %690 = vmatpush1.msra.mxu0 0.0
        %691 = vmatprep.subr.mxu0 0.0
        %692 = vmatpush1.msra.mxu0 0.0
        %693 = vmatprep.subr.mxu0 0.0
        %694 = vmatpush1.msra.mxu0 0.0
        %695 = vmatprep.subr.mxu0 0.0
        %696 = vmatpush1.msra.mxu0 0.0
        %697 = vmatprep.subr.mxu0 0.0
        %698 = vmatpush1.msra.mxu0 0.0
        %699 = vmatprep.subr.mxu0 0.0
        %700 = vmatpush1.msra.mxu0 0.0
        %701 = vmatprep.subr.mxu0 0.0
        %702 = vmatpush1.msra.mxu0 0.0
        %703 = vmatprep.subr.mxu0 0.0
        %704 = vmatpush1.msra.mxu0 0.0
        %705 = vmatprep.subr.mxu0 0.0
        %706 = vmatpush1.msra.mxu0 0.0
        %707 = vmatprep.mubr.f32.mxu0 0.0
        %708 = vmatmul.mubr.f32.gmra.mrb[0].mxu0 %v617
        %v709 = vpop.f32.mrb[0].mxu0
        %v710 = vadd.f32 %v614, %v709
        %v711 = vpop.f32.mrb[0].mxu0
        %v712 = vadd.f32 %v614, %v711
        %713 = vdwg.mxu0
        %714 = vmatprep.subr.mxu0 %v629
        %715 = vmatpush1.msra.mxu0 %v626
        %716 = vmatprep.subr.mxu0 0.0
        %717 = vmatpush1.msra.mxu0 0.0
        %718 = vmatprep.subr.mxu0 0.0
        %719 = vmatpush1.msra.mxu0 0.0
        %720 = vmatprep.subr.mxu0 0.0
        %721 = vmatpush1.msra.mxu0 0.0
        %722 = vmatprep.subr.mxu0 0.0
        %723 = vmatpush1.msra.mxu0 0.0
        %724 = vmatprep.subr.mxu0 0.0
        %725 = vmatpush1.msra.mxu0 0.0
        %726 = vmatprep.subr.mxu0 0.0
        %727 = vmatpush1.msra.mxu0 0.0
        %728 = vmatprep.subr.mxu0 0.0
        %729 = vmatpush1.msra.mxu0 0.0
        %730 = vmatprep.subr.mxu0 0.0
        %731 = vmatpush1.msra.mxu0 0.0
        %732 = vmatprep.subr.mxu0 0.0
        %733 = vmatpush1.msra.mxu0 0.0
        %734 = vmatprep.subr.mxu0 0.0
        %735 = vmatpush1.msra.mxu0 0.0
        %736 = vmatprep.subr.mxu0 0.0
        %737 = vmatpush1.msra.mxu0 0.0
        %738 = vmatprep.subr.mxu0 0.0
        %739 = vmatpush1.msra.mxu0 0.0
        %740 = vmatprep.subr.mxu0 0.0
        %741 = vmatpush1.msra.mxu0 0.0
        %742 = vmatprep.subr.mxu0 0.0
        %743 = vmatpush1.msra.mxu0 0.0
        %744 = vmatprep.subr.mxu0 0.0
        %745 = vmatpush1.msra.mxu0 0.0
        %746 = vmatprep.subr.mxu0 0.0
        %747 = vmatpush1.msra.mxu0 0.0
        %748 = vmatprep.subr.mxu0 0.0
        %749 = vmatpush1.msra.mxu0 0.0
        %750 = vmatprep.subr.mxu0 0.0
        %751 = vmatpush1.msra.mxu0 0.0
        %752 = vmatprep.subr.mxu0 0.0
        %753 = vmatpush1.msra.mxu0 0.0
        %754 = vmatprep.subr.mxu0 0.0
        %755 = vmatpush1.msra.mxu0 0.0
        %756 = vmatprep.subr.mxu0 0.0
        %757 = vmatpush1.msra.mxu0 0.0
        %758 = vmatprep.subr.mxu0 0.0
        %759 = vmatpush1.msra.mxu0 0.0
        %760 = vmatprep.subr.mxu0 0.0
        %761 = vmatpush1.msra.mxu0 0.0
        %762 = vmatprep.subr.mxu0 0.0
        %763 = vmatpush1.msra.mxu0 0.0
        %764 = vmatprep.subr.mxu0 0.0
        %765 = vmatpush1.msra.mxu0 0.0
        %766 = vmatprep.subr.mxu0 0.0
        %767 = vmatpush1.msra.mxu0 0.0
        %768 = vmatprep.subr.mxu0 0.0
        %769 = vmatpush1.msra.mxu0 0.0
        %770 = vmatprep.subr.mxu0 0.0
        %771 = vmatpush1.msra.mxu0 0.0
        %772 = vmatprep.subr.mxu0 0.0
        %773 = vmatpush1.msra.mxu0 0.0
        %774 = vmatprep.subr.mxu0 0.0
        %775 = vmatpush1.msra.mxu0 0.0
        %776 = vmatprep.subr.mxu0 0.0
        %777 = vmatpush1.msra.mxu0 0.0
        %778 = vmatprep.mubr.f32.mxu0 0.0
        %779 = vmatmul.mubr.f32.gmra.mrb[0].mxu0 %v617
        %v780 = vpop.f32.mrb[0].mxu0
        %v781 = vadd.f32 %v614, %v780
        %v782 = vpop.f32.mrb[0].mxu0
        %v783 = vadd.f32 %v614, %v782
        %784 = vdwg.mxu0
        %785 = vmatprep.subr.mxu0 %v635
        %786 = vmatpush1.msra.mxu0 %v632
        %787 = vmatprep.subr.mxu0 0.0
        %788 = vmatpush1.msra.mxu0 0.0
        %789 = vmatprep.subr.mxu0 0.0
        %790 = vmatpush1.msra.mxu0 0.0
        %791 = vmatprep.subr.mxu0 0.0
        %792 = vmatpush1.msra.mxu0 0.0
        %793 = vmatprep.subr.mxu0 0.0
        %794 = vmatpush1.msra.mxu0 0.0
        %795 = vmatprep.subr.mxu0 0.0
        %796 = vmatpush1.msra.mxu0 0.0
        %797 = vmatprep.subr.mxu0 0.0
        %798 = vmatpush1.msra.mxu0 0.0
        %799 = vmatprep.subr.mxu0 0.0
        %800 = vmatpush1.msra.mxu0 0.0
        %801 = vmatprep.subr.mxu0 0.0
        %802 = vmatpush1.msra.mxu0 0.0
        %803 = vmatprep.subr.mxu0 0.0
        %804 = vmatpush1.msra.mxu0 0.0
        %805 = vmatprep.subr.mxu0 0.0
        %806 = vmatpush1.msra.mxu0 0.0
        %807 = vmatprep.subr.mxu0 0.0
        %808 = vmatpush1.msra.mxu0 0.0
        %809 = vmatprep.subr.mxu0 0.0
        %810 = vmatpush1.msra.mxu0 0.0
        %811 = vmatprep.subr.mxu0 0.0
        %812 = vmatpush1.msra.mxu0 0.0
        %813 = vmatprep.subr.mxu0 0.0
        %814 = vmatpush1.msra.mxu0 0.0
        %815 = vmatprep.subr.mxu0 0.0
        %816 = vmatpush1.msra.mxu0 0.0
        %817 = vmatprep.subr.mxu0 0.0
        %818 = vmatpush1.msra.mxu0 0.0
        %819 = vmatprep.subr.mxu0 0.0
        %820 = vmatpush1.msra.mxu0 0.0
        %821 = vmatprep.subr.mxu0 0.0
        %822 = vmatpush1.msra.mxu0 0.0
        %823 = vmatprep.subr.mxu0 0.0
        %824 = vmatpush1.msra.mxu0 0.0
        %825 = vmatprep.subr.mxu0 0.0
        %826 = vmatpush1.msra.mxu0 0.0
        %827 = vmatprep.subr.mxu0 0.0
        %828 = vmatpush1.msra.mxu0 0.0
        %829 = vmatprep.subr.mxu0 0.0
        %830 = vmatpush1.msra.mxu0 0.0
        %831 = vmatprep.subr.mxu0 0.0
        %832 = vmatpush1.msra.mxu0 0.0
        %833 = vmatprep.subr.mxu0 0.0
        %834 = vmatpush1.msra.mxu0 0.0
        %835 = vmatprep.subr.mxu0 0.0
        %836 = vmatpush1.msra.mxu0 0.0
        %837 = vmatprep.subr.mxu0 0.0
        %838 = vmatpush1.msra.mxu0 0.0
        %839 = vmatprep.subr.mxu0 0.0
        %840 = vmatpush1.msra.mxu0 0.0
        %841 = vmatprep.subr.mxu0 0.0
        %842 = vmatpush1.msra.mxu0 0.0
        %843 = vmatprep.subr.mxu0 0.0
        %844 = vmatpush1.msra.mxu0 0.0
        %845 = vmatprep.subr.mxu0 0.0
        %846 = vmatpush1.msra.mxu0 0.0
        %847 = vmatprep.subr.mxu0 0.0
        %848 = vmatpush1.msra.mxu0 0.0
        %849 = vmatprep.mubr.f32.mxu0 0.0
        %850 = vmatmul.mubr.f32.gmra.mrb[0].mxu0 %v617
        %v851 = vpop.f32.mrb[0].mxu0
        %v852 = vadd.f32 %v614, %v851
        %v853 = vpop.f32.mrb[0].mxu0
        %v854 = vadd.f32 %v614, %v853
        %855 = vdwg.mxu0
        %856 = vmatprep.subr.mxu0 %v641
        %857 = vmatpush1.msra.mxu0 %v638
        %858 = vmatprep.subr.mxu0 0.0
        %859 = vmatpush1.msra.mxu0 0.0
        %860 = vmatprep.subr.mxu0 0.0
        %861 = vmatpush1.msra.mxu0 0.0
        %862 = vmatprep.subr.mxu0 0.0
        %863 = vmatpush1.msra.mxu0 0.0
        %864 = vmatprep.subr.mxu0 0.0
        %865 = vmatpush1.msra.mxu0 0.0
        %866 = vmatprep.subr.mxu0 0.0
        %867 = vmatpush1.msra.mxu0 0.0
        %868 = vmatprep.subr.mxu0 0.0
        %869 = vmatpush1.msra.mxu0 0.0
        %870 = vmatprep.subr.mxu0 0.0
        %871 = vmatpush1.msra.mxu0 0.0
        %872 = vmatprep.subr.mxu0 0.0
        %873 = vmatpush1.msra.mxu0 0.0
        %874 = vmatprep.subr.mxu0 0.0
        %875 = vmatpush1.msra.mxu0 0.0
        %876 = vmatprep.subr.mxu0 0.0
        %877 = vmatpush1.msra.mxu0 0.0
        %878 = vmatprep.subr.mxu0 0.0
        %879 = vmatpush1.msra.mxu0 0.0
        %880 = vmatprep.subr.mxu0 0.0
        %881 = vmatpush1.msra.mxu0 0.0
        %882 = vmatprep.subr.mxu0 0.0
        %883 = vmatpush1.msra.mxu0 0.0
        %884 = vmatprep.subr.mxu0 0.0
        %885 = vmatpush1.msra.mxu0 0.0
        %886 = vmatprep.subr.mxu0 0.0
        %887 = vmatpush1.msra.mxu0 0.0
        %888 = vmatprep.subr.mxu0 0.0
        %889 = vmatpush1.msra.mxu0 0.0
        %890 = vmatprep.subr.mxu0 0.0
        %891 = vmatpush1.msra.mxu0 0.0
        %892 = vmatprep.subr.mxu0 0.0
        %893 = vmatpush1.msra.mxu0 0.0
        %894 = vmatprep.subr.mxu0 0.0
        %895 = vmatpush1.msra.mxu0 0.0
        %896 = vmatprep.subr.mxu0 0.0
        %897 = vmatpush1.msra.mxu0 0.0
        %898 = vmatprep.subr.mxu0 0.0
        %899 = vmatpush1.msra.mxu0 0.0
        %900 = vmatprep.subr.mxu0 0.0
        %901 = vmatpush1.msra.mxu0 0.0
        %902 = vmatprep.subr.mxu0 0.0
        %903 = vmatpush1.msra.mxu0 0.0
        %904 = vmatprep.subr.mxu0 0.0
        %905 = vmatpush1.msra.mxu0 0.0
        %906 = vmatprep.subr.mxu0 0.0
        %907 = vmatpush1.msra.mxu0 0.0
        %908 = vmatprep.subr.mxu0 0.0
        %909 = vmatpush1.msra.mxu0 0.0
        %910 = vmatprep.subr.mxu0 0.0
        %911 = vmatpush1.msra.mxu0 0.0
        %912 = vmatprep.subr.mxu0 0.0
        %913 = vmatpush1.msra.mxu0 0.0
        %914 = vmatprep.subr.mxu0 0.0
        %915 = vmatpush1.msra.mxu0 0.0
        %916 = vmatprep.subr.mxu0 0.0
        %917 = vmatpush1.msra.mxu0 0.0
        %918 = vmatprep.subr.mxu0 0.0
        %919 = vmatpush1.msra.mxu0 0.0
        %920 = vmatprep.mubr.f32.mxu0 0.0
        %921 = vmatmul.mubr.f32.gmra.mrb[0].mxu0 %v617
        %v922 = vpop.f32.mrb[0].mxu0
        %v923 = vadd.f32 %v614, %v922
        %v924 = vpop.f32.mrb[0].mxu0
        %v925 = vadd.f32 %v614, %v924
        %926 = vdwg.mxu0
        %v931 = vadd.f32 %v710, %v261
        %v932 = vadd.f32 %v712, %v276
        %v933 = vadd.f32 %v781, %v262
        %v934 = vadd.f32 %v783, %v277
        %v935 = vadd.f32 %v852, %v263
        %v936 = vadd.f32 %v854, %v278
        %v937 = vadd.f32 %v923, %v264
        %v938 = vadd.f32 %v925, %v279
        %vm939 = vcmp.gt.f32.partialorder %v931, 0.0
        %vm940 = vcmp.gt.f32.partialorder %v932, 0.0
        %vm941 = vcmp.gt.f32.partialorder %v933, 0.0
        %vm942 = vcmp.gt.f32.partialorder %v934, 0.0
        %vm943 = vcmp.gt.f32.partialorder %v935, 0.0
        %vm944 = vcmp.gt.f32.partialorder %v936, 0.0
        %vm945 = vcmp.gt.f32.partialorder %v937, 0.0
        %vm946 = vcmp.gt.f32.partialorder %v938, 0.0
        %v947 = vmul.f32 %v931, 0.01
        %v948 = vmul.f32 %v932, 0.01
        %v949 = vmul.f32 %v933, 0.01
        %v950 = vmul.f32 %v934, 0.01
        %v951 = vmul.f32 %v935, 0.01
        %v952 = vmul.f32 %v936, 0.01
        %v953 = vmul.f32 %v937, 0.01
        %v954 = vmul.f32 %v938, 0.01
        %v955 = vsel %vm939, %v931, %v947
        %v956 = vsel %vm940, %v932, %v948
        %v957 = vsel %vm941, %v933, %v949
        %v958 = vsel %vm942, %v934, %v950
        %v959 = vsel %vm943, %v935, %v951
        %v960 = vsel %vm944, %v936, %v952
        %v961 = vsel %vm945, %v937, %v953
        %v962 = vsel %vm946, %v938, %v954
        %v971 = vcombine.low %v955, %v956
        %v972 = vcombine.low %v957, %v958
        %v973 = vcombine.low %v959, %v960
        %v974 = vcombine.low %v961, %v962
        %979 = vst [vmem:[%s258] sm:$0xff] %v971
        %980 = vst [vmem:[%s258 + $0x8] sm:$0xff] %v972
        %981 = vst [vmem:[%s258 + $0x10] sm:$0xff] %v973
        %982 = vst [vmem:[%s258 + $0x18] sm:$0xff] %v974
        %s983 = sand.u32 %s156, 1
        %s984 = scalar_lea.sflag [#allocation4], %s983
        %s985 = sand.u32 %s156, 1
        %s986 = smul.addr %s985, 32
        %s987 = scalar_lea.vmem [#allocation5], %s986
        // Predicated region
        $region45: #{tpu_custom_call.1} parent=39 // pred_check
          %p988 = pneg %p166
        $region46: #{tpu_custom_call.1} parent=39 // pred_check_branch
          %990 = sbr.rel (%p988) target = $region48
        $region47: #{tpu_custom_call.1} parent=39 // pred_region
          %s991 = smul.u32 8, %s27
          %s993 = ssub.s32 512, 512
          %994 = vsyncadd %s984, %s993
          %s995 = smul.addr %s26, 32
          %s996 = sadd.s32 %s991, %s995
          %s997 = smul.addr %s996, 64
          %s998 = scalar_lea.hbm %s5, %s997
          %s1000 = sshll.u32 %s987, 4
          %s1001 = int_to_ptr.vmem [resolvable:$true] %s1000
          %1003 = dma.vmem_to_hbm [thread:$0]  %s1001, 512, %s998, %s984
        $region48: #{tpu_custom_call.1} parent=39 // pred_fallthru
          _
      $region40: #{tpu_custom_call.1} parent=5 // pred_fallthru
        _
      %p1004 = scmp.le.s32.totalorder 2, %s17
      // Predicated region
      $region49: #{tpu_custom_call.1} parent=5 // pred_check
        %p1005 = pneg %p1004
      $region50: #{tpu_custom_call.1} parent=5 // pred_check_branch
        %1007 = sbr.rel (%p1005) target = $region52
      $region51: #{tpu_custom_call.1} parent=5 // pred_region
        %s1008 = ssub.s32 %s17, 2
        // Predicated region
        $region53: #{tpu_custom_call.1} parent=51 // pred_check
          %p1009 = pneg %p172
        $region54: #{tpu_custom_call.1} parent=51 // pred_check_branch
          %1011 = sbr.rel (%p1009) target = $region56
        $region55: #{tpu_custom_call.1} parent=51 // pred_region
          %s1012 = sand.u32 %s157, 1
          %s1013 = scalar_lea.sflag [#allocation4], %s1012
          %s1014 = sand.u32 %s157, 1
          %s1015 = smul.addr %s1014, 32
          %s1016 = scalar_lea.vmem [#allocation5], %s1015
          %1017 = dma.done %s1013, 512
        $region56: #{tpu_custom_call.1} parent=51 // pred_fallthru
          _
      $region52: #{tpu_custom_call.1} parent=5 // pred_fallthru
        _
    $region6: #{tpu_custom_call.1} parent=1 // loop_footer
      %s21 = sadd.s32 1, %s17
    $region7: #{tpu_custom_call.1} parent=1 // loop_footer_branch
      %16 = sbr.rel target = $region3
    $region8: #{tpu_custom_call.1} parent=1 // loop_exit
      _
    %1018 = vsyncpa [#allocation3], 1
    %s1019 = scalar_lea.sflag [#allocation3], 1
    %1020 = vsyncpa %s1019, 1
    %1021 = vsyncpa [#allocation4], 1
    %s1022 = scalar_lea.sflag [#allocation4], 1
    %1023 = vsyncpa %s1022, 1

</llo_original>
